<compile_context>
chip_gen: v5e
topology: v5e:2x2
jax: 0.10.0
libtpu: 0.0.40
codegen_flags: <defaults>
</compile_context>

<pallas_src>
import functools
import math

import jax
import jax.numpy as jnp
from jax.experimental import pallas as pl
from jax.experimental.pallas import tpu as pltpu

ALPHA = 0.25
GAMMA = 2.0
LANES = 128


def _cdiv(a, b):
    return -(-a // b)


def _chip_config():
    """Per-generation tuning: (max_row_block, vmem_limit_bytes, n_part, part_sem)."""
    try:
        kind = jax.devices()[0].device_kind.lower()
    except Exception:
        kind = ""
    if "7" in kind:
        # v7x: 2 TensorCores/chip but only 64 MiB VMEM per TC and the kernel is
        # VALU-bound there -> 2 MiB tiles, capped vmem limit, explicit core-parallel
        # partition axis for the 2-TC split.
        part_sem = getattr(pltpu, "CORE_PARALLEL", "parallel")
        return 4096, 40 * 1024 * 1024, 2, part_sem
    # v5e / v6e (single TC, 128 MiB physical VMEM, HBM-bound): 2 MiB tiles amortize
    # the ~0.35us/step pipeline overhead; explicit vmem_limit is mandatory on v5e.
    return 4096, 64 * 1024 * 1024, 1, "parallel"


def _focal_math(x, y, alpha, gamma):
    """Per-element sigmoid focal loss (x, y float32).  Pure jnp: usable both
    inside the Pallas kernels and for the tiny JAX tail epilogue."""
    t = jnp.exp(-jnp.abs(x))                     # exp(-|x|)            (EUP)
    l = jnp.log1p(t)                             # log(1 + exp(-|x|))   (EUP)
    log_probs = jnp.minimum(x, 0.0) - l          # log(sigmoid(x))
    log_1_probs = -jnp.maximum(x, 0.0) - l       # log(1 - sigmoid(x))
    probs = jnp.exp(log_probs)                   # sigmoid(x) on EUP, no VALU divide
    d = y - probs
    if gamma == 2.0:
        coeff = -(d * d)                         # |d|**2, no pow/exp/log
    else:
        coeff = -jnp.power(jnp.abs(d), gamma)
    ce = log_probs * y * alpha + log_1_probs * (1.0 - y) * (1.0 - alpha)
    return ce * coeff


def _focal_sum_kernel(x_ref, y_ref, out_ref, acc_ref, *,
                      alpha, gamma, rows, row_block, steps, mask_needed):
    j = pl.program_id(1)

    @pl.when(j == 0)
    def _():
        acc_ref[...] = jnp.zeros_like(acc_ref)

    # amp.custom_fwd(cast_inputs=float32): compute in f32 regardless of input dtype
    x = x_ref[...].astype(jnp.float32)
    y = y_ref[...].astype(jnp.float32)
    loss = _focal_math(x, y, alpha, gamma)

    def _accumulate(v):
        # vreg accumulation: pure VPU adds, no cross-lane work inside the loop
        if row_block % 8 == 0:
            acc_ref[...] += v.reshape(row_block // 8, 8, LANES).sum(axis=0)
        else:
            # only reachable for a single tiny full-array block
            acc_ref[0:1, :] += v.sum(axis=0, keepdims=True)

    if mask_needed:
        start_row = (pl.program_id(0) * steps + j) * row_block
        is_full = start_row + row_block <= rows

        @pl.when(is_full)
        def _():
            _accumulate(loss)

        @pl.when(jnp.logical_not(is_full))
        def _():
            # Row-level mask, only on the (rare) over-running step(s).
            valid_rows = rows - start_row          # may be <= 0 for clamped blocks
            row_ids = jax.lax.broadcasted_iota(jnp.int32, (row_block, LANES), 0)
            _accumulate(jnp.where(row_ids < valid_rows, loss, 0.0))
    else:
        _accumulate(loss)

    @pl.when(j == pl.num_programs(1) - 1)
    def _():
        out_ref[...] = acc_ref[...].sum(axis=0, keepdims=True)


def _focal_elem_kernel(x_ref, y_ref, o_ref, *, alpha, gamma):
    x = x_ref[...].astype(jnp.float32)
    y = y_ref[...].astype(jnp.float32)
    o_ref[...] = _focal_math(x, y, alpha, gamma)


def focal_loss_v2(logits, label, alpha=ALPHA, gamma=GAMMA, reduction="mean",
                  max_row_block=None, num_partitions=None):
    """Sigmoid focal loss, forward only (matches FocalLossV2.forward).

    logits / label: same shape, any rank (e.g. NCHW).  Labels may be narrow
    dtypes (bf16/int8/bool) -- they are cast to f32 in-kernel, so narrow label
    streams directly cut HBM bytes (no wrapper-side cast is ever added)."""
    assert logits.shape == label.shape
    shape = logits.shape
    total = int(math.prod(shape)) if shape else 1
    alpha = float(alpha)
    gamma = float(gamma)

    cfg_row_block, vmem_limit, cfg_n_part, part_sem = _chip_config()
    if max_row_block is not None:
        cfg_row_block = int(max_row_block)
    if num_partitions is not None:
        cfg_n_part = int(num_partitions)

    flat_x = logits.reshape(-1)
    flat_y = label.reshape(-1)

    rows = total // LANES            # full 128-lane rows
    tail = total - rows * LANES      # 0..127 leftover elements (JAX epilogue)

    # Tiny inputs (< 128 elements): not worth a kernel launch.
    if rows == 0:
        loss = _focal_math(flat_x.astype(jnp.float32),
                           flat_y.astype(jnp.float32), alpha, gamma)
        if reduction == "mean":
            return jnp.sum(loss) / float(total)
        if reduction == "sum":
            return jnp.sum(loss)
        return loss.reshape(shape)

    main = rows * LANES
    if tail:
        # Only non-128-aligned totals pay a slice; the <128-elem tail is pure JAX.
        x2 = flat_x[:main].reshape(rows, LANES)
        y2 = flat_y[:main].reshape(rows, LANES)
        tail_loss = _focal_math(flat_x[main:].astype(jnp.float32),
                                flat_y[main:].astype(jnp.float32), alpha, gamma)
    else:
        # Typical NCHW case: pure reshape, zero extra HBM copies.
        x2 = flat_x.reshape(rows, LANES)
        y2 = flat_y.reshape(rows, LANES)
        tail_loss = None

    # Single full-array block for small inputs, 32-aligned big tiles otherwise.
    row_block = rows if rows <= cfg_row_block else cfg_row_block
    n_blocks = _cdiv(rows, row_block)
    in_bytes = int(x2.size) * x2.dtype.itemsize + int(y2.size) * y2.dtype.itemsize

    if reduction in ("mean", "sum"):
        n_part = max(1, min(cfg_n_part, n_blocks))
        steps = _cdiv(n_blocks, n_part)
        block_overrun = n_part * steps > n_blocks               # whole blocks past the end
        mask_needed = block_overrun or (n_blocks * row_block != rows)

        if block_overrun:
            def in_map(p, j):
                # Clamp OOB block indices; the kernel masks their contribution to 0.
                return (jnp.minimum(p * steps + j, n_blocks - 1), 0)
        else:
            def in_map(p, j):
                return (p * steps + j, 0)

        kernel = functools.partial(
            _focal_sum_kernel, alpha=alpha, gamma=gamma, rows=rows,
            row_block=row_block, steps=steps, mask_needed=mask_needed)

        if n_part > 1 and not isinstance(part_sem, str):
            dims = (part_sem, getattr(pltpu, "ARBITRARY", "arbitrary"))
        elif n_part > 1:
            dims = (part_sem, "arbitrary")
        else:
            dims = ("arbitrary", "arbitrary")

        partials = pl.pallas_call(
            kernel,
            out_shape=jax.ShapeDtypeStruct((n_part, LANES), jnp.float32),
            grid_spec=pltpu.PrefetchScalarGridSpec(
                num_scalar_prefetch=0,
                grid=(n_part, steps),
                in_specs=[
                    pl.BlockSpec((row_block, LANES), in_map),
                    pl.BlockSpec((row_block, LANES), in_map),
                ],
                out_specs=pl.BlockSpec((1, LANES), lambda p, j: (p, 0)),
                scratch_shapes=[pltpu.VMEM((8, LANES), jnp.float32)],
            ),
            compiler_params=pltpu.CompilerParams(
                dimension_semantics=dims,
                vmem_limit_bytes=vmem_limit,
            ),
            cost_estimate=pl.CostEstimate(
                flops=16 * rows * LANES,
                transcendentals=3 * rows * LANES,
                bytes_accessed=in_bytes + n_part * LANES * 4,
            ),
        )(x2, y2)

        s = jnp.sum(partials)                 # tiny (n_part, 128) reduce in plain JAX
        if tail_loss is not None:
            s = s + jnp.sum(tail_loss)
        if reduction == "mean":
            return s / float(total)
        return s

    # reduction == 'none' (or any other value, matching the PyTorch module):
    # return the per-element loss tensor (float32, like amp cast_inputs).
    # Partial-last-block input overhang produces garbage rows whose output
    # writeback is dropped by Pallas, so no masking is needed here.
    kernel = functools.partial(_focal_elem_kernel, alpha=alpha, gamma=gamma)
    out = pl.pallas_call(
        kernel,
        out_shape=jax.ShapeDtypeStruct((rows, LANES), jnp.float32),
        grid_spec=pltpu.PrefetchScalarGridSpec(
            num_scalar_prefetch=0,
            grid=(n_blocks,),
            in_specs=[
                pl.BlockSpec((row_block, LANES), lambda i: (i, 0)),
                pl.BlockSpec((row_block, LANES), lambda i: (i, 0)),
            ],
            out_specs=pl.BlockSpec((row_block, LANES), lambda i: (i, 0)),
        ),
        compiler_params=pltpu.CompilerParams(
            dimension_semantics=("parallel",),
            vmem_limit_bytes=vmem_limit,
        ),
        cost_estimate=pl.CostEstimate(
            flops=16 * rows * LANES,
            transcendentals=3 * rows * LANES,
            bytes_accessed=in_bytes + rows * LANES * 4,
        ),
    )(x2, y2)

    flat_loss = out.reshape(-1)               # free reshape when tail == 0
    if tail_loss is not None:
        flat_loss = jnp.concatenate([flat_loss, tail_loss])
    return flat_loss.reshape(shape)


# ---------------------------------------------------------------------------
# Pure-JAX reference (matches the PyTorch forward)
# ---------------------------------------------------------------------------
def _focal_elem_ref(logits, label, alpha=ALPHA, gamma=GAMMA):
    x = logits.astype(jnp.float32)
    y = label.astype(jnp.float32)
    probs = jax.nn.sigmoid(x)
    coeff = -jnp.power(jnp.abs(y - probs), gamma)
    ce = (jax.nn.log_sigmoid(x) * y * alpha
          + jax.nn.log_sigmoid(-x) * (1.0 - y) * (1.0 - alpha))
    return ce * coeff


if __name__ == "__main__":
    key = jax.random.PRNGKey(0)
    k1, k2, k3, k4, k5, k6 = jax.random.split(key, 6)

    # 1) small NCHW, 128-aligned total (zero-copy path), reduction='mean'
    logits = jax.random.normal(k1, (2, 4, 16, 16), dtype=jnp.float32)
    label = jax.random.bernoulli(k2, 0.5, (2, 4, 16, 16)).astype(jnp.float32)
    loss = jax.block_until_ready(focal_loss_v2(logits, label))
    ref = jnp.mean(_focal_elem_ref(logits, label))
    assert jnp.allclose(loss, ref, rtol=2e-5, atol=1e-6), (loss, ref)

    # 2) ragged total (not a multiple of 128) exercises the JAX tail epilogue;
    #    bf16 labels exercise the narrow-label stream.  reduction='sum'.
    logits2 = jax.random.normal(k3, (3, 5, 7, 11), dtype=jnp.float32)
    label2 = jax.random.bernoulli(k4, 0.5, (3, 5, 7, 11)).astype(jnp.bfloat16)
    loss2 = jax.block_until_ready(focal_loss_v2(logits2, label2, reduction="sum"))
    ref2 = jnp.sum(_focal_elem_ref(logits2, label2))
    assert jnp.allclose(loss2, ref2, rtol=1e-4, atol=1e-4), (loss2, ref2)

    # 3) reduction='none' returns the per-element loss tensor
    loss3 = jax.block_until_ready(focal_loss_v2(logits, label, reduction="none"))
    ref3 = _focal_elem_ref(logits, label)
    assert loss3.shape == logits.shape
    assert jnp.allclose(loss3, ref3, rtol=2e-5, atol=1e-6)

    # 4) multi-block + partial last block + partition over-run (forced small tile)
    #    exercises the pl.when-gated row mask and the clamped index_map.
    logits4 = jax.random.normal(k5, (5, 8, 128), dtype=jnp.float32)   # rows = 40
    label4 = jax.random.bernoulli(k6, 0.5, (5, 8, 128)).astype(jnp.float32)
    loss4 = jax.block_until_ready(
        focal_loss_v2(logits4, label4, reduction="mean",
                      max_row_block=16, num_partitions=2))
    ref4 = jnp.mean(_focal_elem_ref(logits4, label4))
    assert jnp.allclose(loss4, ref4, rtol=2e-5, atol=1e-6), (loss4, ref4)

    print("KERNEL_OK")
</pallas_src>

<mosaic_0001>
module attributes {stable_mosaic.version = 11 : i64} {
  func.func @_focal_sum_kernel(%arg0: i32, %arg1: i32, %arg2: memref<16x128xf32, #tpu.memory_space<vmem>>, %arg3: memref<16x128xf32, #tpu.memory_space<vmem>>, %arg4: memref<1x128xf32, #tpu.memory_space<vmem>>, %arg5: memref<8x128xf32, #tpu.memory_space<vmem>>) attributes {dimension_semantics = [#tpu.dimension_semantics<arbitrary>, #tpu.dimension_semantics<arbitrary>], iteration_bounds = array<i64: 1, 1>, scalar_prefetch = 0 : i64, scratch_operands = 1 : i64, tpu.core_type = #tpu.core_type<tc>, window_params = [{transform_indices = @transform_0, window_bounds = array<i64: 16, 128>}, {transform_indices = @transform_1, window_bounds = array<i64: 16, 128>}, {transform_indices = @transform_2, window_bounds = array<i64: 1, 128>}]} {
    %c0_i32 = arith.constant 0 : i32
    %0 = arith.cmpi eq, %arg1, %c0_i32 : i32
    %1 = arith.extui %0 : i1 to i32
    %c0_i32_0 = arith.constant 0 : i32
    %2 = arith.cmpi ne, %1, %c0_i32_0 : i32
    scf.if %2 {
      %cst_18 = arith.constant 0.000000e+00 : f32
      %41 = vector.broadcast %cst_18 : f32 to vector<8x128xf32>
      %c0_19 = arith.constant 0 : index
      %c0_20 = arith.constant 0 : index
      %42 = vector.load %arg5[%c0_19, %c0_20] : memref<8x128xf32, #tpu.memory_space<vmem>>, vector<8x128xf32>
      tpu.vector_store %arg5[%c0_19, %c0_20], %41 {strides = array<i32>} : memref<8x128xf32, #tpu.memory_space<vmem>>, vector<8x128xf32>,
    } else {
    }
    %c0 = arith.constant 0 : index
    %c0_1 = arith.constant 0 : index
    %3 = vector.load %arg2[%c0, %c0_1] : memref<16x128xf32, #tpu.memory_space<vmem>>, vector<16x128xf32>
    %c0_2 = arith.constant 0 : index
    %c0_3 = arith.constant 0 : index
    %4 = vector.load %arg3[%c0_2, %c0_3] : memref<16x128xf32, #tpu.memory_space<vmem>>, vector<16x128xf32>
    %5 = math.absf %3 : vector<16x128xf32>
    %cst = arith.constant 0.000000e+00 : f32
    %6 = vector.broadcast %cst : f32 to vector<16x128xf32>
    %7 = arith.subf %6, %5 : vector<16x128xf32>
    %8 = math.exp %7 : vector<16x128xf32>
    %9 = math.log1p %8 : vector<16x128xf32>
    %cst_4 = arith.constant 0.000000e+00 : f32
    %10 = vector.broadcast %cst_4 : f32 to vector<16x128xf32>
    %11 = arith.minimumf %3, %10 : vector<16x128xf32>
    %12 = arith.subf %11, %9 : vector<16x128xf32>
    %cst_5 = arith.constant 0.000000e+00 : f32
    %13 = vector.broadcast %cst_5 : f32 to vector<16x128xf32>
    %14 = arith.maximumf %3, %13 : vector<16x128xf32>
    %cst_6 = arith.constant 0.000000e+00 : f32
    %15 = vector.broadcast %cst_6 : f32 to vector<16x128xf32>
    %16 = arith.subf %15, %14 : vector<16x128xf32>
    %17 = arith.subf %16, %9 : vector<16x128xf32>
    %18 = math.exp %12 : vector<16x128xf32>
    %19 = arith.subf %4, %18 : vector<16x128xf32>
    %20 = arith.mulf %19, %19 : vector<16x128xf32>
    %cst_7 = arith.constant 0.000000e+00 : f32
    %21 = vector.broadcast %cst_7 : f32 to vector<16x128xf32>
    %22 = arith.subf %21, %20 : vector<16x128xf32>
    %23 = arith.mulf %12, %4 : vector<16x128xf32>
    %cst_8 = arith.constant 2.500000e-01 : f32
    %24 = vector.broadcast %cst_8 : f32 to vector<16x128xf32>
    %25 = arith.mulf %23, %24 : vector<16x128xf32>
    %cst_9 = arith.constant 1.000000e+00 : f32
    %26 = vector.broadcast %cst_9 : f32 to vector<16x128xf32>
    %27 = arith.subf %26, %4 : vector<16x128xf32>
    %28 = arith.mulf %17, %27 : vector<16x128xf32>
    %cst_10 = arith.constant 7.500000e-01 : f32
    %29 = vector.broadcast %cst_10 : f32 to vector<16x128xf32>
    %30 = arith.mulf %28, %29 : vector<16x128xf32>
    %31 = arith.addf %25, %30 : vector<16x128xf32>
    %32 = arith.mulf %31, %22 : vector<16x128xf32>
    %c0_11 = arith.constant 0 : index
    %c0_12 = arith.constant 0 : index
    %33 = vector.load %arg5[%c0_11, %c0_12] : memref<8x128xf32, #tpu.memory_space<vmem>>, vector<8x128xf32>
    %34 = vector.shape_cast %32 : vector<16x128xf32> to vector<2x8x128xf32>
    %cst_13 = arith.constant dense<0.000000e+00> : vector<8x128xf32>
    %35 = vector.multi_reduction <add>, %34, %cst_13 [0] : vector<2x8x128xf32> to vector<8x128xf32>
    %36 = arith.addf %33, %35 : vector<8x128xf32>
    %c0_14 = arith.constant 0 : index
    %c0_15 = arith.constant 0 : index
    %37 = vector.load %arg5[%c0_14, %c0_15] : memref<8x128xf32, #tpu.memory_space<vmem>>, vector<8x128xf32>
    tpu.vector_store %arg5[%c0_14, %c0_15], %36 {strides = array<i32>} : memref<8x128xf32, #tpu.memory_space<vmem>>, vector<8x128xf32>,
    %c0_i32_16 = arith.constant 0 : i32
    %38 = arith.cmpi eq, %arg1, %c0_i32_16 : i32
    %39 = arith.extui %38 : i1 to i32
    %c0_i32_17 = arith.constant 0 : i32
    %40 = arith.cmpi ne, %39, %c0_i32_17 : i32
    scf.if %40 {
      %c0_18 = arith.constant 0 : index
      %c0_19 = arith.constant 0 : index
      %41 = vector.load %arg5[%c0_18, %c0_19] : memref<8x128xf32, #tpu.memory_space<vmem>>, vector<8x128xf32>
      %cst_20 = arith.constant dense<0.000000e+00> : vector<128xf32>
      %42 = vector.multi_reduction <add>, %41, %cst_20 [0] : vector<8x128xf32> to vector<128xf32>
      %43 = vector.shape_cast %42 : vector<128xf32> to vector<1x128xf32>
      %c0_21 = arith.constant 0 : index
      %c0_22 = arith.constant 0 : index
      %44 = vector.load %arg4[%c0_21, %c0_22] : memref<1x128xf32, #tpu.memory_space<vmem>>, vector<1x128xf32>
      tpu.vector_store %arg4[%c0_21, %c0_22], %43 {strides = array<i32>} : memref<1x128xf32, #tpu.memory_space<vmem>>, vector<1x128xf32>,
    } else {
    }
    return
  }
  func.func @transform_0(%arg0: i32, %arg1: i32) -> (i32, i32) {
    %c1_i32 = arith.constant 1 : i32
    %0 = arith.muli %arg0, %c1_i32 : i32
    %1 = arith.addi %0, %arg1 : i32
    %c0_i32 = arith.constant 0 : i32
    %c0_i32_0 = arith.constant 0 : i32
    return %1, %c0_i32 : i32, i32
  }
  func.func @transform_1(%arg0: i32, %arg1: i32) -> (i32, i32) {
    %c1_i32 = arith.constant 1 : i32
    %0 = arith.muli %arg0, %c1_i32 : i32
    %1 = arith.addi %0, %arg1 : i32
    %c0_i32 = arith.constant 0 : i32
    %c0_i32_0 = arith.constant 0 : i32
    return %1, %c0_i32 : i32, i32
  }
  func.func @transform_2(%arg0: i32, %arg1: i32) -> (i32, i32) {
    %c0_i32 = arith.constant 0 : i32
    %c0_i32_0 = arith.constant 0 : i32
    return %arg0, %c0_i32 : i32, i32
  }
}

</mosaic_0001>

<llo_original>
// kernel: tpu_custom_call.1
$region0: #{tpu_custom_call.1}
  #allocation0 [shape = 'u32[]', space=smem, size = 0x4, offset = 0x4, fixed_abs, tag = 'smem constant byte address 0x4 - core index']
  #allocation1 [shape = 'u32[72,128]{1,0:T(1,128)}', space=vmem, size = 0x9000, scoped, tag = 'internal scratch']
  #allocation2 [shape = 'f32[8,128]{1,0:T(8,128)}', space=vmem, size = 0x1000, scoped, tag = 'scratch operand']
  %s0 = inlined_call_operand.hbm [shape: f32[16,128], index: 0, kind: input, shape index: {}]
  %s1 = inlined_call_operand.hbm [shape: f32[16,128], index: 1, kind: input, shape index: {}]
  %s2 = inlined_call_operand.hbm [shape: f32[1,128], index: 2, kind: output, shape index: {}]
  %s3 = sld [smem:[#allocation0]]
  $region34: #{tpu_custom_call.1} parent=0
    _
  %s5 = ssub.s32 1, %s3
  %s6 = scalar_select 0, %s5, %s3
  $region1: #{tpu_custom_call.1} parent=0
    #allocation3 [shape = 'u8[8192]{0}', space=vmem, size = 0x2000, scoped, tag = 'input window, operand 0, single buffered']
    #allocation4 [shape = 's32[1]{0}', space=sflag, size = 0x4, scoped, tag = 'scoped memory for tpu_custom_call.1']
    #allocation5 [shape = 's32[1]{0}', space=sflag, size = 0x4, scoped, tag = 'scoped memory for tpu_custom_call.1']
    #allocation6 [shape = 'u8[8192]{0}', space=vmem, size = 0x2000, scoped, tag = 'input window, operand 1, single buffered']
    #allocation7 [shape = 's32[1]{0}', space=sflag, size = 0x4, scoped, tag = 'scoped memory for tpu_custom_call.1']
    #allocation8 [shape = 'u8[512]{0}', space=vmem, size = 0x400, scoped, tag = 'output window, operand 0, single buffered']
    %7 = vsyncpa [#allocation4], 0
    %8 = vsyncpa [#allocation7], 0
    %9 = vsyncpa [#allocation5], 0
    // Predicated region
    $region2: #{tpu_custom_call.1} parent=1 // pred_check
      _
    $region3: #{tpu_custom_call.1} parent=1 // pred_check_branch
      %11 = sbr.rel (0) target = $region5
    $region4: #{tpu_custom_call.1} parent=1 // pred_region
      %s12 = sadd.s32 0, 0
      %s13 = smul.u32 2, %s12
      %15 = vsyncadd [#allocation4], 0
      %s16 = smul.addr %s13, 8
      %s17 = scalar_lea.hbm %s0, %s16
      %s18 = sshll.u32 %s17, 4
      %s19 = int_to_ptr.hbm [resolvable:$true] %s18
      %s20 = sshll.u32 [#allocation3], 4
      %s21 = int_to_ptr.vmem [resolvable:$true] %s20
      %26 = dma.hbm_to_vmem [thread:$0]  %s19, 256, %s21, [#allocation4], 128, 128, 8
    $region5: #{tpu_custom_call.1} parent=1 // pred_fallthru
      _
    // Predicated region
    $region6: #{tpu_custom_call.1} parent=1 // pred_check
      _
    $region7: #{tpu_custom_call.1} parent=1 // pred_check_branch
      %28 = sbr.rel (0) target = $region9
    $region8: #{tpu_custom_call.1} parent=1 // pred_region
      %s29 = sadd.s32 0, 0
      %s30 = smul.u32 2, %s29
      %32 = vsyncadd [#allocation7], 0
      %s33 = smul.addr %s30, 8
      %s34 = scalar_lea.hbm %s1, %s33
      %s35 = sshll.u32 %s34, 4
      %s36 = int_to_ptr.hbm [resolvable:$true] %s35
      %s37 = sshll.u32 [#allocation6], 4
      %s38 = int_to_ptr.vmem [resolvable:$true] %s37
      %43 = dma.hbm_to_vmem [thread:$0]  %s36, 256, %s38, [#allocation7], 128, 128, 8
    $region9: #{tpu_custom_call.1} parent=1 // pred_fallthru
      _
    // Predicated region
    $region10: #{tpu_custom_call.1} parent=1 // pred_check
      _
    $region11: #{tpu_custom_call.1} parent=1 // pred_check_branch
      %45 = sbr.rel (0) target = $region13
    $region12: #{tpu_custom_call.1} parent=1 // pred_region
      %47 = dma.done [#allocation4], 256
    $region13: #{tpu_custom_call.1} parent=1 // pred_fallthru
      _
    // Predicated region
    $region14: #{tpu_custom_call.1} parent=1 // pred_check
      _
    $region15: #{tpu_custom_call.1} parent=1 // pred_check_branch
      %49 = sbr.rel (0) target = $region17
    $region16: #{tpu_custom_call.1} parent=1 // pred_region
      %51 = dma.done [#allocation7], 256
    $region17: #{tpu_custom_call.1} parent=1 // pred_fallthru
      _
    %s52 = sadd.s32 0, 0
    %s53 = smul.u32 2, %s52
    %s54 = sadd.s32 0, 0
    %s55 = smul.u32 2, %s54
    %p56 = scmp.eq.s32.totalorder 0, 0
    // Predicated region
    $region18: #{tpu_custom_call.1} parent=1 // pred_check
      %p57 = pneg %p56
    $region19: #{tpu_custom_call.1} parent=1 // pred_check_branch
      %59 = sbr.rel (%p57) target = $region21
    $region20: #{tpu_custom_call.1} parent=1 // pred_region
      %60 = vst [vmem:[#allocation2] sm:$0xff] 0.0
    $region21: #{tpu_custom_call.1} parent=1 // pred_fallthru
      _
    %v61 = vld [vmem:[#allocation3] sm:$0xff]
    %v62 = vld [vmem:[#allocation3 + $0x8] sm:$0xff]
    %v63 = vld [vmem:[#allocation6] sm:$0xff]
    %v64 = vld [vmem:[#allocation6 + $0x8] sm:$0xff]
    %v65 = vand.u32 2147483647, %v61
    %v66 = vand.u32 2147483647, %v62
    %v67 = vsub.f32 0.0, %v65
    %v68 = vsub.f32 0.0, %v66
    %v69 = vmul.f32 %v67, 1.442695
    %v70 = vpow.pop %v69
    %v71 = vmul.f32 %v68, 1.442695
    %v72 = vpow.pop %v71
    %v73 = vadd.f32 %v70, 1.0
    %v74 = vlog2.pop %v73
    %v75 = vmul.f32 %v74, 0.6931472
    %v76 = vmul.f32 -0.5, %v70
    %v77 = vadd.f32 %v76, 1.0
    %v78 = vmul.f32 %v77, %v70
    %v79 = vand.u32 2147483647, %v70
    %vm80 = vcmp.lt.f32.partialorder %v79, 0.0004427343
    %v81 = vsel %vm80, %v78, %v75
    %v82 = vadd.f32 %v72, 1.0
    %v83 = vlog2.pop %v82
    %v84 = vmul.f32 %v83, 0.6931472
    %v85 = vmul.f32 -0.5, %v72
    %v86 = vadd.f32 %v85, 1.0
    %v87 = vmul.f32 %v86, %v72
    %v88 = vand.u32 2147483647, %v72
    %vm89 = vcmp.lt.f32.partialorder %v88, 0.0004427343
    %v90 = vsel %vm89, %v87, %v84
    %v91 = vmin.f32 %v61, 0.0
    %v92 = vmin.f32 %v62, 0.0
    %v93 = vsub.f32 %v91, %v81
    %v94 = vsub.f32 %v92, %v90
    %v95 = vmax.f32 %v61, 0.0
    %v96 = vmax.f32 %v62, 0.0
    %v97 = vsub.f32 0.0, %v95
    %v98 = vsub.f32 0.0, %v96
    %v99 = vsub.f32 %v97, %v81
    %v100 = vsub.f32 %v98, %v90
    %v101 = vmul.f32 %v93, 1.442695
    %v102 = vpow.pop %v101
    %v103 = vmul.f32 %v94, 1.442695
    %v104 = vpow.pop %v103
    %v105 = vsub.f32 %v63, %v102
    %v106 = vsub.f32 %v64, %v104
    %v107 = vmul.f32 %v105, %v105
    %v108 = vmul.f32 %v106, %v106
    %v109 = vsub.f32 0.0, %v107
    %v110 = vsub.f32 0.0, %v108
    %v111 = vmul.f32 %v93, %v63
    %v112 = vmul.f32 %v94, %v64
    %v113 = vmul.f32 %v111, 0.25
    %v114 = vmul.f32 %v112, 0.25
    %v115 = vsub.f32 1.0, %v63
    %v116 = vsub.f32 1.0, %v64
    %v117 = vmul.f32 %v99, %v115
    %v118 = vmul.f32 %v100, %v116
    %v119 = vmul.f32 %v117, 0.75
    %v120 = vmul.f32 %v118, 0.75
    %v121 = vadd.f32 %v113, %v119
    %v122 = vadd.f32 %v114, %v120
    %v123 = vmul.f32 %v121, %v109
    %v124 = vmul.f32 %v122, %v110
    %v125 = vld [vmem:[#allocation2] sm:$0xff]
    %v126 = vadd.f32 %v123, %v124
    %v127 = vadd.f32 %v125, %v126
    %128 = vst [vmem:[#allocation2] sm:$0xff] %v127
    // Predicated region
    $region22: #{tpu_custom_call.1} parent=1 // pred_check
      %p129 = pneg %p56
    $region23: #{tpu_custom_call.1} parent=1 // pred_check_branch
      %131 = sbr.rel (%p129) target = $region25
    $region24: #{tpu_custom_call.1} parent=1 // pred_region
      %v132 = vld [vmem:[#allocation2] sm:$0xff]
      %v133 = vrot.slane %v132, 4
      %v134 = vadd.f32 %v132, %v133
      %v135 = vrot.slane %v134, 2
      %v136 = vadd.f32 %v134, %v135
      %v137 = vrot.slane %v136, 1
      %v138 = vadd.f32 %v136, %v137
      %139 = vst [vmem:[#allocation8] sm:$0x1] %v138
    $region25: #{tpu_custom_call.1} parent=1 // pred_fallthru
      _
    // Predicated region
    $region26: #{tpu_custom_call.1} parent=1 // pred_check
      _
    $region27: #{tpu_custom_call.1} parent=1 // pred_check_branch
      %141 = sbr.rel (0) target = $region29
    $region28: #{tpu_custom_call.1} parent=1 // pred_region
      %143 = vsyncadd [#allocation5], 0
      %s145 = sshll.u32 [#allocation8], 4
      %s146 = int_to_ptr.vmem [resolvable:$true] %s145
      %s147 = sshll.u32 %s2, 4
      %s148 = int_to_ptr.hbm [resolvable:$true] %s147
      %150 = dma.vmem_to_hbm [thread:$0]  %s146, 16, %s148, [#allocation5]
    $region29: #{tpu_custom_call.1} parent=1 // pred_fallthru
      _
    // Predicated region
    $region30: #{tpu_custom_call.1} parent=1 // pred_check
      _
    $region31: #{tpu_custom_call.1} parent=1 // pred_check_branch
      %152 = sbr.rel (0) target = $region33
    $region32: #{tpu_custom_call.1} parent=1 // pred_region
      %154 = dma.done [#allocation5], 16
    $region33: #{tpu_custom_call.1} parent=1 // pred_fallthru
      _
    %155 = vsyncpa [#allocation4], 1
    %156 = vsyncpa [#allocation7], 1
    %157 = vsyncpa [#allocation5], 1

</llo_original>
